<compile_context>
chip_gen: v5e
topology: v5e:2x2
jax: 0.10.0
libtpu: 0.0.40
codegen_flags: <defaults>
</compile_context>

<pallas_src>
import math
import jax
import jax.numpy as jnp
from jax.experimental import pallas as pl
from jax.experimental.pallas import tpu as pltpu


def _round_up(x, m):
    return ((x + m - 1) // m) * m


def mlp_kernel(x_ref, w1_ref, b1_ref, w2_ref, b2_ref, w3t_ref, b3_ref, ot_ref):
    """Fused fc1 -> ReLU -> fc2 -> ReLU -> fc3 for one batch tile.

    MXU operands use the (pre-cast) weight dtype; x is cast in-kernel.
    Accumulation, bias-add and ReLU stay in f32.  fc3 is emitted transposed,
    (out_dim, tb) with batch on lanes, so the store is lane-dense without
    padding the tiny out_dim up to 128.
    """
    x = x_ref[...].astype(w1_ref.dtype)                       # in-kernel cast (no host astype op)
    h1 = jnp.dot(x, w1_ref[...], preferred_element_type=jnp.float32) + b1_ref[...]
    h1 = jnp.maximum(h1, 0.0)
    h2 = jnp.dot(h1.astype(w2_ref.dtype), w2_ref[...],
                 preferred_element_type=jnp.float32) + b2_ref[...]
    h2 = jnp.maximum(h2, 0.0)
    # (out_dim, tb) = w3t (out_dim, hidden) . h2^T   (contraction over hidden)
    out_t = jax.lax.dot_general(
        w3t_ref[...], h2.astype(w3t_ref.dtype),
        dimension_numbers=(((1,), (1,)), ((), ())),
        preferred_element_type=jnp.float32)
    ot_ref[...] = (out_t + b3_ref[...]).astype(ot_ref.dtype)  # no ReLU after fc3


def prepare_params(params, compute_dtype=jnp.float32):
    """One-time layout/cast into kernel form (call once, reuse across forwards).

    Weights (in, out) in compute_dtype; fc3 pre-transposed to (out, hidden);
    biases in f32 with b1/b2 as (1, hidden) and b3 as (out, 1) for broadcast.
    """
    return {
        "w1": params["w1"].astype(compute_dtype),
        "w2": params["w2"].astype(compute_dtype),
        "w3t": jnp.transpose(params["w3"]).astype(compute_dtype),     # (out_dim, hidden)
        "b1": params["b1"].reshape(1, -1).astype(jnp.float32),
        "b2": params["b2"].reshape(1, -1).astype(jnp.float32),
        "b3": params["b3"].reshape(-1, 1).astype(jnp.float32),        # (out_dim, 1)
    }


def mlp_forward(x, prepared, *, block_b=2048):
    """x: (B, input_dim) f32.  prepared: output of prepare_params().

    Returns (B, output_dim) f32, matching the torch MLP forward.
    """
    w1, b1 = prepared["w1"], prepared["b1"]
    w2, b2 = prepared["w2"], prepared["b2"]
    w3t, b3 = prepared["w3t"], prepared["b3"]

    B, in_dim = x.shape
    hidden = w1.shape[1]
    out_dim = w3t.shape[0]

    # --- batch tiling: one grid step for small B; big lane-aligned tiles else ---
    if B <= block_b:
        tb = max(8, _round_up(B, 8))          # f32 sublane pack; grid=(1,)
    else:
        tb = _round_up(block_b, 128)          # multi-step: keep output store lane-dense
    b_padded = _round_up(B, tb)
    if b_padded != B:
        x = jnp.pad(x, ((0, b_padded - B), (0, 0)))
    grid = (b_padded // tb,)

    # Weights/biases: full-array blocks with constant index_maps -> DMA'd to
    # VMEM once and reused across all grid steps.
    def resident(a):
        return pl.BlockSpec(a.shape, lambda i: (0, 0))

    # VMEM budget from actual footprint (double-buffered tiles + resident
    # weights + f32 intermediates) with headroom; tiny at these sizes.
    wbytes = sum(int(a.size) * a.dtype.itemsize for a in (w1, b1, w2, b2, w3t, b3))
    step_bytes = (tb * in_dim * 4              # x tile (f32)
                  + out_dim * tb * 4           # transposed out tile (f32)
                  + 2 * tb * hidden * 4)       # h1/h2 live intermediates (f32)
    vmem_bytes = int(min(max(2 * (step_bytes + wbytes) + (1 << 20), 4 << 20), 48 << 20))

    out_t = pl.pallas_call(
        mlp_kernel,
        out_shape=jax.ShapeDtypeStruct((out_dim, b_padded), jnp.float32),
        grid=grid,
        in_specs=[
            pl.BlockSpec((tb, in_dim), lambda i: (i, 0)),
            resident(w1), resident(b1),
            resident(w2), resident(b2),
            resident(w3t), resident(b3),
        ],
        out_specs=pl.BlockSpec((out_dim, tb), lambda i: (0, i)),
        compiler_params=pltpu.CompilerParams(
            dimension_semantics=("parallel",),   # only matters for multi-tile grids (v7x 2 TCs)
            vmem_limit_bytes=vmem_bytes,
        ),
    )(x, w1, b1, w2, b2, w3t, b3)

    return out_t[:, :B].T                       # back to (B, out_dim)


def init_params(key, input_dim, output_dim, hidden_dim):
    """Mirror torch.nn.Linear defaults: U[-1/sqrt(fan_in), 1/sqrt(fan_in)].
    Weights stored transposed, i.e. shape (in_features, out_features)."""
    ks = jax.random.split(key, 6)

    def linear(kw, kb, fan_in, fan_out):
        bound = 1.0 / math.sqrt(fan_in)
        w = jax.random.uniform(kw, (fan_in, fan_out), jnp.float32, -bound, bound)
        b = jax.random.uniform(kb, (1, fan_out), jnp.float32, -bound, bound)
        return w, b

    w1, b1 = linear(ks[0], ks[1], input_dim, hidden_dim)
    w2, b2 = linear(ks[2], ks[3], hidden_dim, hidden_dim)
    w3, b3 = linear(ks[4], ks[5], hidden_dim, output_dim)
    return {"w1": w1, "b1": b1, "w2": w2, "b2": b2, "w3": w3, "b3": b3}


if __name__ == "__main__":
    # DQN-style MLP: state_dim=16 -> hidden=32 -> hidden=32 -> actions=4, batch=64.
    # Small B -> single grid step with all weights VMEM-resident.
    input_dim, hidden_dim, output_dim = 16, 32, 4
    batch = 64

    key = jax.random.PRNGKey(0)
    k_x, k_p = jax.random.split(key)
    x = jax.random.normal(k_x, (batch, input_dim), jnp.float32)
    params = init_params(k_p, input_dim, output_dim, hidden_dim)

    # Torch-equivalent f32 reference (highest precision dots).
    hp = jax.lax.Precision.HIGHEST
    ref = jnp.maximum(jnp.dot(x, params["w1"], precision=hp) + params["b1"], 0.0)
    ref = jnp.maximum(jnp.dot(ref, params["w2"], precision=hp) + params["b2"], 0.0)
    ref = jnp.dot(ref, params["w3"], precision=hp) + params["b3"]

    # Default path: f32 MXU operands (parity with the torch f32 forward; the
    # MXU cost is negligible at this size).  Tolerance is conservative to
    # cover MXU f32-pass rounding across TPU generations.
    prepared_f32 = prepare_params(params, compute_dtype=jnp.float32)
    out = mlp_forward(x, prepared_f32)
    jax.block_until_ready(out)
    assert out.shape == (batch, output_dim)
    assert jnp.allclose(out, ref, atol=2e-2, rtol=2e-2)

    # Optional bf16-operand path (v6e/v7x throughput); looser tolerance.
    prepared_bf16 = prepare_params(params, compute_dtype=jnp.bfloat16)
    out_bf16 = mlp_forward(x, prepared_bf16)
    jax.block_until_ready(out_bf16)
    assert out_bf16.shape == (batch, output_dim)
    assert jnp.allclose(out_bf16, ref, atol=6e-2, rtol=6e-2)

    print("KERNEL_OK")
</pallas_src>

<mosaic_0001>
module attributes {stable_mosaic.version = 11 : i64} {
  func.func @mlp_kernel(%arg0: i32, %arg1: memref<64x16xf32, #tpu.memory_space<vmem>>, %arg2: memref<16x32xf32, #tpu.memory_space<vmem>>, %arg3: memref<1x32xf32, #tpu.memory_space<vmem>>, %arg4: memref<32x32xf32, #tpu.memory_space<vmem>>, %arg5: memref<1x32xf32, #tpu.memory_space<vmem>>, %arg6: memref<4x32xf32, #tpu.memory_space<vmem>>, %arg7: memref<4x1xf32, #tpu.memory_space<vmem>>, %arg8: memref<4x64xf32, #tpu.memory_space<vmem>>) attributes {dimension_semantics = [#tpu.dimension_semantics<parallel>], iteration_bounds = array<i64: 1>, scalar_prefetch = 0 : i64, scratch_operands = 0 : i64, tpu.core_type = #tpu.core_type<tc>, window_params = [{transform_indices = @transform_0, window_bounds = array<i64: 64, 16>}, {pipeline_mode = #tpu.pipeline_mode<synchronous>, transform_indices = @transform_1, window_bounds = array<i64: 16, 32>}, {pipeline_mode = #tpu.pipeline_mode<synchronous>, transform_indices = @transform_2, window_bounds = array<i64: 1, 32>}, {pipeline_mode = #tpu.pipeline_mode<synchronous>, transform_indices = @transform_3, window_bounds = array<i64: 32, 32>}, {pipeline_mode = #tpu.pipeline_mode<synchronous>, transform_indices = @transform_4, window_bounds = array<i64: 1, 32>}, {pipeline_mode = #tpu.pipeline_mode<synchronous>, transform_indices = @transform_5, window_bounds = array<i64: 4, 32>}, {pipeline_mode = #tpu.pipeline_mode<synchronous>, transform_indices = @transform_6, window_bounds = array<i64: 4, 1>}, {transform_indices = @transform_7, window_bounds = array<i64: 4, 64>}]} {
    %c0 = arith.constant 0 : index
    %c0_0 = arith.constant 0 : index
    %0 = vector.load %arg1[%c0, %c0_0] : memref<64x16xf32, #tpu.memory_space<vmem>>, vector<64x16xf32>
    %c0_1 = arith.constant 0 : index
    %c0_2 = arith.constant 0 : index
    %1 = vector.load %arg2[%c0_1, %c0_2] : memref<16x32xf32, #tpu.memory_space<vmem>>, vector<16x32xf32>
    %cst = arith.constant dense<0.000000e+00> : vector<64x32xf32>
    %2 = tpu.matmul %0, %1, %cst {dimension_numbers = #tpu.dot_dimension_numbers<[1], [0], [0], [1], [0, 0, 1, 1], [], []>} : vector<64x16xf32>, vector<16x32xf32>, vector<64x32xf32> -> vector<64x32xf32>
    %c0_3 = arith.constant 0 : index
    %c0_4 = arith.constant 0 : index
    %3 = vector.load %arg3[%c0_3, %c0_4] : memref<1x32xf32, #tpu.memory_space<vmem>>, vector<1x32xf32>
    %4 = vector.broadcast %3 : vector<1x32xf32> to vector<64x32xf32>
    %5 = arith.addf %2, %4 : vector<64x32xf32>
    %cst_5 = arith.constant 0.000000e+00 : f32
    %6 = vector.broadcast %cst_5 : f32 to vector<64x32xf32>
    %7 = arith.maximumf %5, %6 : vector<64x32xf32>
    %c0_6 = arith.constant 0 : index
    %c0_7 = arith.constant 0 : index
    %8 = vector.load %arg4[%c0_6, %c0_7] : memref<32x32xf32, #tpu.memory_space<vmem>>, vector<32x32xf32>
    %cst_8 = arith.constant dense<0.000000e+00> : vector<64x32xf32>
    %9 = tpu.matmul %7, %8, %cst_8 {dimension_numbers = #tpu.dot_dimension_numbers<[1], [0], [0], [1], [0, 0, 1, 1], [], []>} : vector<64x32xf32>, vector<32x32xf32>, vector<64x32xf32> -> vector<64x32xf32>
    %c0_9 = arith.constant 0 : index
    %c0_10 = arith.constant 0 : index
    %10 = vector.load %arg5[%c0_9, %c0_10] : memref<1x32xf32, #tpu.memory_space<vmem>>, vector<1x32xf32>
    %11 = vector.broadcast %10 : vector<1x32xf32> to vector<64x32xf32>
    %12 = arith.addf %9, %11 : vector<64x32xf32>
    %cst_11 = arith.constant 0.000000e+00 : f32
    %13 = vector.broadcast %cst_11 : f32 to vector<64x32xf32>
    %14 = arith.maximumf %12, %13 : vector<64x32xf32>
    %c0_12 = arith.constant 0 : index
    %c0_13 = arith.constant 0 : index
    %15 = vector.load %arg6[%c0_12, %c0_13] : memref<4x32xf32, #tpu.memory_space<vmem>>, vector<4x32xf32>
    %cst_14 = arith.constant dense<0.000000e+00> : vector<4x64xf32>
    %16 = tpu.matmul %15, %14, %cst_14 {dimension_numbers = #tpu.dot_dimension_numbers<[1], [1], [0], [0], [0, 0, 1, 0], [], []>} : vector<4x32xf32>, vector<64x32xf32>, vector<4x64xf32> -> vector<4x64xf32>
    %c0_15 = arith.constant 0 : index
    %c0_16 = arith.constant 0 : index
    %17 = vector.load %arg7[%c0_15, %c0_16] : memref<4x1xf32, #tpu.memory_space<vmem>>, vector<4x1xf32>
    %18 = vector.broadcast %17 : vector<4x1xf32> to vector<4x64xf32>
    %19 = arith.addf %16, %18 : vector<4x64xf32>
    %c0_17 = arith.constant 0 : index
    %c0_18 = arith.constant 0 : index
    %20 = vector.load %arg8[%c0_17, %c0_18] : memref<4x64xf32, #tpu.memory_space<vmem>>, vector<4x64xf32>
    tpu.vector_store %arg8[%c0_17, %c0_18], %19 {strides = array<i32>} : memref<4x64xf32, #tpu.memory_space<vmem>>, vector<4x64xf32>,
    return
  }
  func.func @transform_0(%arg0: i32) -> (i32, i32) {
    %c0_i32 = arith.constant 0 : i32
    %c0_i32_0 = arith.constant 0 : i32
    return %arg0, %c0_i32 : i32, i32
  }
  func.func @transform_1(%arg0: i32) -> (i32, i32) {
    %c0_i32 = arith.constant 0 : i32
    %c0_i32_0 = arith.constant 0 : i32
    %c0_i32_1 = arith.constant 0 : i32
    return %c0_i32, %c0_i32_0 : i32, i32
  }
  func.func @transform_2(%arg0: i32) -> (i32, i32) {
    %c0_i32 = arith.constant 0 : i32
    %c0_i32_0 = arith.constant 0 : i32
    %c0_i32_1 = arith.constant 0 : i32
    return %c0_i32, %c0_i32_0 : i32, i32
  }
  func.func @transform_3(%arg0: i32) -> (i32, i32) {
    %c0_i32 = arith.constant 0 : i32
    %c0_i32_0 = arith.constant 0 : i32
    %c0_i32_1 = arith.constant 0 : i32
    return %c0_i32, %c0_i32_0 : i32, i32
  }
  func.func @transform_4(%arg0: i32) -> (i32, i32) {
    %c0_i32 = arith.constant 0 : i32
    %c0_i32_0 = arith.constant 0 : i32
    %c0_i32_1 = arith.constant 0 : i32
    return %c0_i32, %c0_i32_0 : i32, i32
  }
  func.func @transform_5(%arg0: i32) -> (i32, i32) {
    %c0_i32 = arith.constant 0 : i32
    %c0_i32_0 = arith.constant 0 : i32
    %c0_i32_1 = arith.constant 0 : i32
    return %c0_i32, %c0_i32_0 : i32, i32
  }
  func.func @transform_6(%arg0: i32) -> (i32, i32) {
    %c0_i32 = arith.constant 0 : i32
    %c0_i32_0 = arith.constant 0 : i32
    %c0_i32_1 = arith.constant 0 : i32
    return %c0_i32, %c0_i32_0 : i32, i32
  }
  func.func @transform_7(%arg0: i32) -> (i32, i32) {
    %c0_i32 = arith.constant 0 : i32
    %c0_i32_0 = arith.constant 0 : i32
    return %c0_i32, %arg0 : i32, i32
  }
}

</mosaic_0001>

<llo_original>
// kernel: tpu_custom_call.1
$region0: #{tpu_custom_call.1}
  #allocation0 [shape = 'u32[]', space=smem, size = 0x4, offset = 0x4, fixed_abs, tag = 'smem constant byte address 0x4 - core index']
  #allocation1 [shape = 'u32[72,128]{1,0:T(1,128)}', space=vmem, size = 0x9000, scoped, tag = 'internal scratch']
  %s0 = inlined_call_operand.vmem [shape: f32[64,16], index: 0, kind: input, shape index: {}]
  %s1 = inlined_call_operand.vmem [shape: f32[16,32], index: 1, kind: input, shape index: {}]
  %s2 = inlined_call_operand.vmem [shape: f32[1,32], index: 2, kind: input, shape index: {}]
  %s3 = inlined_call_operand.vmem [shape: f32[32,32], index: 3, kind: input, shape index: {}]
  %s4 = inlined_call_operand.vmem [shape: f32[1,32], index: 4, kind: input, shape index: {}]
  %s5 = inlined_call_operand.vmem [shape: f32[4,32], index: 5, kind: input, shape index: {}]
  %s6 = inlined_call_operand.vmem [shape: f32[4,1], index: 6, kind: input, shape index: {}]
  %s7 = inlined_call_operand.hbm [shape: f32[4,64], index: 7, kind: output, shape index: {}]
  %s8 = sld [smem:[#allocation0]]
  $region38: #{tpu_custom_call.1} parent=0
    _
  %s10 = ssub.s32 1, %s8
  %s11 = scalar_select 0, %s10, %s8
  $region1: #{tpu_custom_call.1} parent=0
    #allocation2 [shape = 'u8[2048]{0}', space=vmem, size = 0x800, scoped, tag = 'output window, operand 0, single buffered']
    #allocation3 [shape = 's32[1]{0}', space=sflag, size = 0x4, scoped, tag = 'scoped memory for tpu_custom_call.1']
    %12 = vsyncpa [#allocation3], 0
    // Predicated region
    $region2: #{tpu_custom_call.1} parent=1 // pred_check
      _
    $region3: #{tpu_custom_call.1} parent=1 // pred_check_branch
      %14 = sbr.rel (0) target = $region5
    $region4: #{tpu_custom_call.1} parent=1 // pred_region
      _
    $region5: #{tpu_custom_call.1} parent=1 // pred_fallthru
      _
    // Predicated region
    $region6: #{tpu_custom_call.1} parent=1 // pred_check
      _
    $region7: #{tpu_custom_call.1} parent=1 // pred_check_branch
      %16 = sbr.rel (0) target = $region9
    $region8: #{tpu_custom_call.1} parent=1 // pred_region
      _
    $region9: #{tpu_custom_call.1} parent=1 // pred_fallthru
      _
    // Predicated region
    $region10: #{tpu_custom_call.1} parent=1 // pred_check
      _
    $region11: #{tpu_custom_call.1} parent=1 // pred_check_branch
      %18 = sbr.rel (0) target = $region13
    $region12: #{tpu_custom_call.1} parent=1 // pred_region
      _
    $region13: #{tpu_custom_call.1} parent=1 // pred_fallthru
      _
    // Predicated region
    $region14: #{tpu_custom_call.1} parent=1 // pred_check
      _
    $region15: #{tpu_custom_call.1} parent=1 // pred_check_branch
      %20 = sbr.rel (0) target = $region17
    $region16: #{tpu_custom_call.1} parent=1 // pred_region
      _
    $region17: #{tpu_custom_call.1} parent=1 // pred_fallthru
      _
    // Predicated region
    $region18: #{tpu_custom_call.1} parent=1 // pred_check
      _
    $region19: #{tpu_custom_call.1} parent=1 // pred_check_branch
      %22 = sbr.rel (0) target = $region21
    $region20: #{tpu_custom_call.1} parent=1 // pred_region
      _
    $region21: #{tpu_custom_call.1} parent=1 // pred_fallthru
      _
    // Predicated region
    $region22: #{tpu_custom_call.1} parent=1 // pred_check
      _
    $region23: #{tpu_custom_call.1} parent=1 // pred_check_branch
      %24 = sbr.rel (0) target = $region25
    $region24: #{tpu_custom_call.1} parent=1 // pred_region
      _
    $region25: #{tpu_custom_call.1} parent=1 // pred_fallthru
      _
    // Predicated region
    $region26: #{tpu_custom_call.1} parent=1 // pred_check
      _
    $region27: #{tpu_custom_call.1} parent=1 // pred_check_branch
      %26 = sbr.rel (0) target = $region29
    $region28: #{tpu_custom_call.1} parent=1 // pred_region
      _
    $region29: #{tpu_custom_call.1} parent=1 // pred_fallthru
      _
    %v27 = vld [vmem:[%s0] sm:$0xff]
    %v28 = vld [vmem:[%s0 + $0x8] sm:$0xff]
    %v29 = vld [vmem:[%s0 + $0x10] sm:$0xff]
    %v30 = vld [vmem:[%s0 + $0x18] sm:$0xff]
    %v31 = vld [vmem:[%s0 + $0x20] sm:$0xff]
    %v32 = vld [vmem:[%s0 + $0x28] sm:$0xff]
    %v33 = vld [vmem:[%s0 + $0x30] sm:$0xff]
    %v34 = vld [vmem:[%s0 + $0x38] sm:$0xff]
    %v35 = vld [vmem:[%s1] sm:$0xff]
    %v36 = vld [vmem:[%s1 + $0x8] sm:$0xff]
    %v37 = vld [vmem:[%s2] sm:$0x1]
    %v39 = vperm.slane %v37, 0
    %vm41 = vcmask 130048
    %v43 = vsel %vm41, %v27, 0
    %v46 = vsel %vm41, %v28, 0
    %v49 = vsel %vm41, %v29, 0
    %v52 = vsel %vm41, %v30, 0
    %v55 = vsel %vm41, %v31, 0
    %v58 = vsel %vm41, %v32, 0
    %v61 = vsel %vm41, %v33, 0
    %v64 = vsel %vm41, %v34, 0
    %66 = vmatpush.msra.mxu0 0.0
    %67 = vmatpush.msra.mxu0 0.0
    %68 = vmatpush.msra.mxu0 0.0
    %69 = vmatpush.msra.mxu0 0.0
    %70 = vmatpush.msra.mxu0 0.0
    %71 = vmatpush.msra.mxu0 0.0
    %72 = vmatpush.msra.mxu0 0.0
    %73 = vmatpush.msra.mxu0 0.0
    %74 = vmatpush.msra.mxu0 0.0
    %75 = vmatpush.msra.mxu0 0.0
    %76 = vmatpush.msra.mxu0 0.0
    %77 = vmatpush.msra.mxu0 0.0
    %78 = vmatpush.msra.mxu0 0.0
    %79 = vmatpush.msra.mxu0 0.0
    %80 = vmatpush.msra.mxu0 %v36
    %81 = vmatpush.msra.mxu0 %v35
    %82 = vmatmul.f32.gmra.mxu0 %v43
    %v83 = vpop.f32.mrf.mxu0
    %v84 = vadd.f32 %v39, %v83
    %85 = vmatmul.f32.gmra.mxu0 %v46
    %v86 = vpop.f32.mrf.mxu0
    %v87 = vadd.f32 %v39, %v86
    %88 = vmatmul.f32.gmra.mxu0 %v49
    %v89 = vpop.f32.mrf.mxu0
    %v90 = vadd.f32 %v39, %v89
    %91 = vmatmul.f32.gmra.mxu0 %v52
    %v92 = vpop.f32.mrf.mxu0
    %v93 = vadd.f32 %v39, %v92
    %94 = vmatmul.f32.gmra.mxu0 %v55
    %v95 = vpop.f32.mrf.mxu0
    %v96 = vadd.f32 %v39, %v95
    %97 = vmatmul.f32.gmra.mxu0 %v58
    %v98 = vpop.f32.mrf.mxu0
    %v99 = vadd.f32 %v39, %v98
    %100 = vmatmul.f32.gmra.mxu0 %v61
    %v101 = vpop.f32.mrf.mxu0
    %v102 = vadd.f32 %v39, %v101
    %103 = vmatmul.f32.gmra.mxu0 %v64
    %v104 = vpop.f32.mrf.mxu0
    %v105 = vadd.f32 %v39, %v104
    %106 = vdwg.mxu0
    %v107 = vmax.f32 %v84, 0.0
    %v108 = vmax.f32 %v87, 0.0
    %v109 = vmax.f32 %v90, 0.0
    %v110 = vmax.f32 %v93, 0.0
    %v111 = vmax.f32 %v96, 0.0
    %v112 = vmax.f32 %v99, 0.0
    %v113 = vmax.f32 %v102, 0.0
    %v114 = vmax.f32 %v105, 0.0
    %v115 = vld [vmem:[%s3] sm:$0xff]
    %v116 = vld [vmem:[%s3 + $0x8] sm:$0xff]
    %v117 = vld [vmem:[%s3 + $0x10] sm:$0xff]
    %v118 = vld [vmem:[%s3 + $0x18] sm:$0xff]
    %v119 = vld [vmem:[%s4] sm:$0x1]
    %v121 = vperm.slane %v119, 0
    %vm123 = vcmask 261120
    %v125 = vsel %vm123, %v107, 0
    %v128 = vsel %vm123, %v108, 0
    %v131 = vsel %vm123, %v109, 0
    %v134 = vsel %vm123, %v110, 0
    %v137 = vsel %vm123, %v111, 0
    %v140 = vsel %vm123, %v112, 0
    %v143 = vsel %vm123, %v113, 0
    %v146 = vsel %vm123, %v114, 0
    %148 = vmatpush.msra.mxu0 0.0
    %149 = vmatpush.msra.mxu0 0.0
    %150 = vmatpush.msra.mxu0 0.0
    %151 = vmatpush.msra.mxu0 0.0
    %152 = vmatpush.msra.mxu0 0.0
    %153 = vmatpush.msra.mxu0 0.0
    %154 = vmatpush.msra.mxu0 0.0
    %155 = vmatpush.msra.mxu0 0.0
    %156 = vmatpush.msra.mxu0 0.0
    %157 = vmatpush.msra.mxu0 0.0
    %158 = vmatpush.msra.mxu0 0.0
    %159 = vmatpush.msra.mxu0 0.0
    %160 = vmatpush.msra.mxu0 %v118
    %161 = vmatpush.msra.mxu0 %v117
    %162 = vmatpush.msra.mxu0 %v116
    %163 = vmatpush.msra.mxu0 %v115
    %164 = vmatmul.f32.gmra.mxu0 %v125
    %v165 = vpop.f32.mrf.mxu0
    %v166 = vadd.f32 %v121, %v165
    %167 = vmatmul.f32.gmra.mxu0 %v128
    %v168 = vpop.f32.mrf.mxu0
    %v169 = vadd.f32 %v121, %v168
    %170 = vmatmul.f32.gmra.mxu0 %v131
    %v171 = vpop.f32.mrf.mxu0
    %v172 = vadd.f32 %v121, %v171
    %173 = vmatmul.f32.gmra.mxu0 %v134
    %v174 = vpop.f32.mrf.mxu0
    %v175 = vadd.f32 %v121, %v174
    %176 = vmatmul.f32.gmra.mxu0 %v137
    %v177 = vpop.f32.mrf.mxu0
    %v178 = vadd.f32 %v121, %v177
    %179 = vmatmul.f32.gmra.mxu0 %v140
    %v180 = vpop.f32.mrf.mxu0
    %v181 = vadd.f32 %v121, %v180
    %182 = vmatmul.f32.gmra.mxu0 %v143
    %v183 = vpop.f32.mrf.mxu0
    %v184 = vadd.f32 %v121, %v183
    %185 = vmatmul.f32.gmra.mxu0 %v146
    %v186 = vpop.f32.mrf.mxu0
    %v187 = vadd.f32 %v121, %v186
    %188 = vdwg.mxu0
    %v189 = vmax.f32 %v166, 0.0
    %v190 = vmax.f32 %v169, 0.0
    %v191 = vmax.f32 %v172, 0.0
    %v192 = vmax.f32 %v175, 0.0
    %v193 = vmax.f32 %v178, 0.0
    %v194 = vmax.f32 %v181, 0.0
    %v195 = vmax.f32 %v184, 0.0
    %v196 = vmax.f32 %v187, 0.0
    %v197 = vld [vmem:[%s5] sm:$0xf]
    %v198 = vld [vmem:[%s6] sm:$0xf]
    %200 = vset.pattern.permute.xlu0 0
    %201 = vperm.xlu0 %200, %v198
    %v202 = vpop.permute.xlu0 %201
    %v205 = vsel %vm123, %v197, 0
    %v208 = vsel %vm123, %v189, 0
    %v211 = vsel %vm123, %v190, 0
    %v214 = vsel %vm123, %v191, 0
    %v217 = vsel %vm123, %v192, 0
    %v220 = vsel %vm123, %v193, 0
    %v223 = vsel %vm123, %v194, 0
    %v226 = vsel %vm123, %v195, 0
    %v229 = vsel %vm123, %v196, 0
    %231 = vmatpush.xpose.msra.mxu0 0.0
    %232 = vmatpush.xpose.msra.mxu0 0.0
    %233 = vmatpush.xpose.msra.mxu0 0.0
    %234 = vmatpush.xpose.msra.mxu0 0.0
    %235 = vmatpush.xpose.msra.mxu0 0.0
    %236 = vmatpush.xpose.msra.mxu0 0.0
    %237 = vmatpush.xpose.msra.mxu0 0.0
    %238 = vmatpush.xpose.msra.mxu0 0.0
    %239 = vmatpush.xpose.msra.mxu0 %v229
    %240 = vmatpush.xpose.msra.mxu0 %v226
    %241 = vmatpush.xpose.msra.mxu0 %v223
    %242 = vmatpush.xpose.msra.mxu0 %v220
    %243 = vmatpush.xpose.msra.mxu0 %v217
    %244 = vmatpush.xpose.msra.mxu0 %v214
    %245 = vmatpush.xpose.msra.mxu0 %v211
    %246 = vmatpush.xpose.msra.mxu0 %v208
    %247 = vmatmul.f32.gmra.mxu0 %v205
    %v248 = vpop.f32.mrf.mxu0
    %v249 = vadd.f32 %v202, %v248
    %250 = vdwg.mxu0
    %vm251 = vcmask 519168
    %252 = vst.msk [vmem:[#allocation2] sm:$0xf] %vm251, %v249
    // Predicated region
    $region30: #{tpu_custom_call.1} parent=1 // pred_check
      _
    $region31: #{tpu_custom_call.1} parent=1 // pred_check_branch
      %254 = sbr.rel (0) target = $region33
    $region32: #{tpu_custom_call.1} parent=1 // pred_region
      %256 = vsyncadd [#allocation3], 0
      %s258 = sshll.u32 [#allocation2], 4
      %s259 = int_to_ptr.vmem [resolvable:$true] %s258
      %s260 = sshll.u32 %s7, 4
      %s261 = int_to_ptr.hbm [resolvable:$true] %s260
      %263 = dma.vmem_to_hbm [thread:$0]  %s259, 64, %s261, [#allocation3]
    $region33: #{tpu_custom_call.1} parent=1 // pred_fallthru
      _
    // Predicated region
    $region34: #{tpu_custom_call.1} parent=1 // pred_check
      _
    $region35: #{tpu_custom_call.1} parent=1 // pred_check_branch
      %265 = sbr.rel (0) target = $region37
    $region36: #{tpu_custom_call.1} parent=1 // pred_region
      %267 = dma.done [#allocation3], 64
    $region37: #{tpu_custom_call.1} parent=1 // pred_fallthru
      _
    %268 = vsyncpa [#allocation3], 1

</llo_original>
